<compile_context>
chip_gen: v7x
topology: tpu7x:2x2x1
jax: 0.10.0
libtpu: 0.0.40
codegen_flags: <defaults>
</compile_context>

<pallas_src>
import functools

import jax
import jax.numpy as jnp
from jax import lax
from jax.experimental import pallas as pl
from jax.experimental.pallas import tpu as pltpu


def _round_up(x, m):
    return ((x + m - 1) // m) * m


# ---------------------------------------------------------------------------
# Dropout: counter-based hash (no pltpu.prng_* -> also runs in CPU interpret)
# ---------------------------------------------------------------------------
def _dropout(h, p, seed, salt):
    """Inverted dropout on an f32 tile.

    keep_mask = (hash23(global_row, col, seed, salt) >= p * 2^23)
    scale folds into a single multiply via jnp.where(keep, 1/(1-p), 0).
    """
    rows, cols = h.shape
    row0 = pl.program_id(0) * rows                     # global row index
    r = lax.broadcasted_iota(jnp.int32, (rows, cols), 0) + row0
    c = lax.broadcasted_iota(jnp.int32, (rows, cols), 1)
    x = r * jnp.int32(cols) + c
    # mix seed (runtime scalar) and per-layer salt (trace-time constant) with
    # large odd multipliers so nearby seeds / layers give uncorrelated masks
    x = x ^ (seed * jnp.int32(0x27D4EB2F))
    x = x ^ jnp.int32((salt * 0x165667B1) & 0x7FFFFFFF)
    # xorshift-multiply rounds (int32 wraparound is fine for mask generation)
    x = (x ^ (x >> 16)) * jnp.int32(0x45D9F3B)
    x = (x ^ (x >> 16)) * jnp.int32(0x45D9F3B)
    x = x ^ (x >> 16)
    thresh = jnp.int32(int(p * (1 << 23)))             # trace-time constant
    keep = (x & jnp.int32(0x7FFFFF)) >= thresh
    scale = jnp.float32(1.0 / (1.0 - p))
    return h * jnp.where(keep, scale, jnp.float32(0.0))


# ---------------------------------------------------------------------------
# Kernel body: fused 3-layer MLP on one batch tile
# ---------------------------------------------------------------------------
def _mlp_body(x_ref, w1_ref, b1_ref, w2_ref, b2_ref, w3_ref, b3_ref, o_ref,
              *, p, seed_ref=None):
    # x arrives f32 from HBM; cast to bf16 on the VPU for the MXU inputs.
    # Accumulation + all elementwise work (bias, ReLU, dropout) stays f32.
    x = x_ref[...].astype(jnp.bfloat16)

    # ---- linear1 + ReLU (+ dropout) ----------------------------------------
    h = jnp.dot(x, w1_ref[...], preferred_element_type=jnp.float32)
    h = jnp.maximum(h + b1_ref[...], 0.0)
    if p > 0.0:
        h = _dropout(h, p, seed_ref[0], salt=1)

    # ---- linear2 + ReLU (+ dropout) ----------------------------------------
    h = jnp.dot(h.astype(jnp.bfloat16), w2_ref[...],
                preferred_element_type=jnp.float32)
    h = jnp.maximum(h + b2_ref[...], 0.0)
    if p > 0.0:
        h = _dropout(h, p, seed_ref[0], salt=2)

    # ---- linear3 ------------------------------------------------------------
    out = jnp.dot(h.astype(jnp.bfloat16), w3_ref[...],
                  preferred_element_type=jnp.float32)
    o_ref[...] = (out + b3_ref[...]).astype(o_ref.dtype)


def _mlp_kernel_train(seed_ref, x_ref, w1_ref, b1_ref, w2_ref, b2_ref,
                      w3_ref, b3_ref, o_ref, *, p):
    _mlp_body(x_ref, w1_ref, b1_ref, w2_ref, b2_ref, w3_ref, b3_ref, o_ref,
              p=p, seed_ref=seed_ref)


def _mlp_kernel_infer(x_ref, w1_ref, b1_ref, w2_ref, b2_ref, w3_ref, b3_ref,
                      o_ref):
    _mlp_body(x_ref, w1_ref, b1_ref, w2_ref, b2_ref, w3_ref, b3_ref, o_ref,
              p=0.0)


# ---------------------------------------------------------------------------
# Wrapper
# ---------------------------------------------------------------------------
def _choose_batch_tile(B, block_b):
    # TB aligned to 16 rows (bf16 sublane packing); big tiles amortize the
    # ~0.35us per-grid-step overhead and feed the 256-wide MXU on v6e/v7x.
    TB = min(block_b, _round_up(B, 16))
    # Keep >= 2 grid steps when the batch allows it so the 'parallel' axis can
    # shard across v7x's two TensorCores (only one extra cheap step on v5e/v6e).
    if pl.cdiv(B, TB) < 2 and B > 16:
        TB = max(16, _round_up(-(-B // 2), 16))
    return TB


def net_forward(x, params, p=0.0, seed=0, block_b=256):
    """Fused MLP forward.

    x:       (B, in_size) float32 (or bf16)
    params:  dict with w1 (in,hid), b1 (hid,), w2 (hid,hid), b2 (hid,),
             w3 (hid,out), b3 (out,)  -- all float32
    p:       dropout probability (Python float; train-mode semantics when > 0)
    """
    B, in_size = x.shape
    n_hidden = params["w1"].shape[1]
    out_size = params["w3"].shape[1]
    p = float(p)

    TB = _choose_batch_tile(B, block_b)
    grid = (pl.cdiv(B, TB),)

    # Lane-dense output: pad the logical out_size to a multiple of 128 lanes
    # (unmasked vst); sliced back below.  Kept f32 to match torch output dtype.
    out_pad = _round_up(out_size, 128)

    # bf16 MXU weights (half the resident VMEM); biases stay f32.
    w1 = params["w1"].astype(jnp.bfloat16)
    w2 = params["w2"].astype(jnp.bfloat16)
    w3 = jnp.zeros((n_hidden, out_pad), jnp.bfloat16).at[:, :out_size].set(
        params["w3"].astype(jnp.bfloat16))
    b1 = params["b1"].reshape(1, n_hidden).astype(jnp.float32)
    b2 = params["b2"].reshape(1, n_hidden).astype(jnp.float32)
    b3 = jnp.zeros((1, out_pad), jnp.float32).at[:, :out_size].set(
        params["b3"].astype(jnp.float32))

    # ---- VMEM accounting (generation-aware) ---------------------------------
    weight_bytes = 2 * (in_size * n_hidden + n_hidden * n_hidden
                        + n_hidden * out_pad)
    bias_bytes = 4 * (2 * n_hidden + out_pad)
    x_tile_bytes = 4 * TB * in_size
    out_tile_bytes = 4 * TB * out_pad
    interm_bytes = 4 * TB * n_hidden * 3          # f32 hidden acts + temps
    vmem_needed = (2 * (weight_bytes + bias_bytes)        # default double-buf
                   + 2 * (x_tile_bytes + out_tile_bytes)  # pipelined tiles
                   + interm_bytes)
    try:
        vmem_cap = int(pltpu.get_tpu_info().vmem_capacity_bytes)
    except Exception:
        vmem_cap = 64 * 1024 * 1024               # conservative (v7x per-TC)
    assert vmem_needed <= int(0.85 * vmem_cap), (
        "weights too large to keep VMEM-resident on this TPU generation; "
        "tile the hidden dim (see TODO at top of file)")
    vmem_limit = int(min(max(vmem_needed + (2 << 20), 16 << 20), vmem_cap))

    def tile_map(i, *_):       # x / out walk the batch axis
        return (i, 0)

    def resident_map(i, *_):   # weights / biases: same block every step
        return (0, 0)

    in_specs = [
        pl.BlockSpec((TB, in_size), tile_map),
        pl.BlockSpec((in_size, n_hidden), resident_map),
        pl.BlockSpec((1, n_hidden), resident_map),
        pl.BlockSpec((n_hidden, n_hidden), resident_map),
        pl.BlockSpec((1, n_hidden), resident_map),
        pl.BlockSpec((n_hidden, out_pad), resident_map),
        pl.BlockSpec((1, out_pad), resident_map),
    ]
    out_specs = pl.BlockSpec((TB, out_pad), tile_map)
    out_shape = jax.ShapeDtypeStruct((B, out_pad), jnp.float32)
    cparams = pltpu.CompilerParams(dimension_semantics=("parallel",),
                                   vmem_limit_bytes=vmem_limit)

    operands = (x, w1, b1, w2, b2, w3, b3)

    if p > 0.0:
        seed_arr = jnp.array([seed], dtype=jnp.int32)
        out = pl.pallas_call(
            functools.partial(_mlp_kernel_train, p=p),
            out_shape=out_shape,
            grid_spec=pltpu.PrefetchScalarGridSpec(
                num_scalar_prefetch=1,           # dropout seed lands in SMEM
                grid=grid, in_specs=in_specs, out_specs=out_specs),
            compiler_params=cparams,
        )(seed_arr, *operands)
    else:
        out = pl.pallas_call(
            _mlp_kernel_infer,
            out_shape=out_shape,
            grid_spec=pltpu.PrefetchScalarGridSpec(
                num_scalar_prefetch=0,           # no seed machinery at p == 0
                grid=grid, in_specs=in_specs, out_specs=out_specs),
            compiler_params=cparams,
        )(*operands)

    return out[:, :out_size]


# ---------------------------------------------------------------------------
# Deterministic parameter init (mimics nn.init.xavier_uniform_ for weights,
# PyTorch default uniform(-1/sqrt(fan_in), 1/sqrt(fan_in)) for biases).
# ---------------------------------------------------------------------------
def init_params(key, in_size, n_hidden, out_size):
    def xavier(key, fan_in, fan_out):
        limit = jnp.sqrt(6.0 / (fan_in + fan_out))
        # stored as (in, out) so the kernel does x @ W
        return jax.random.uniform(key, (fan_in, fan_out), jnp.float32,
                                  -limit, limit)

    def bias(key, fan_in, n):
        bound = 1.0 / jnp.sqrt(fan_in)
        return jax.random.uniform(key, (n,), jnp.float32, -bound, bound)

    ks = jax.random.split(key, 6)
    return {
        "w1": xavier(ks[0], in_size, n_hidden),
        "b1": bias(ks[1], in_size, n_hidden),
        "w2": xavier(ks[2], n_hidden, n_hidden),
        "b2": bias(ks[3], n_hidden, n_hidden),
        "w3": xavier(ks[4], n_hidden, out_size),
        "b3": bias(ks[5], n_hidden, out_size),
    }


def net_forward_ref(x, params):
    """Pure-JAX reference mirroring the kernel's numerics (bf16 MXU, f32 acc)."""
    def mm(a, w):
        return jnp.dot(a.astype(jnp.bfloat16), w.astype(jnp.bfloat16),
                       preferred_element_type=jnp.float32)
    h = jnp.maximum(mm(x, params["w1"]) + params["b1"], 0.0)
    h = jnp.maximum(mm(h, params["w2"]) + params["b2"], 0.0)
    return mm(h, params["w3"]) + params["b3"]


if __name__ == "__main__":
    # Small but non-degenerate shapes: in_size -> n_hidden -> n_hidden -> out_size
    B, in_size, n_hidden, out_size = 64, 128, 256, 10

    key = jax.random.PRNGKey(0)
    kx, kp = jax.random.split(key)
    x = jax.random.normal(kx, (B, in_size), dtype=jnp.float32)
    params = init_params(kp, in_size, n_hidden, out_size)

    # --- inference path (p = 0, PyTorch default): check vs reference --------
    out = jax.block_until_ready(net_forward(x, params, p=0.0))
    ref = net_forward_ref(x, params)
    assert out.shape == (B, out_size)
    assert jnp.allclose(out, ref, atol=2e-3, rtol=2e-3), "mismatch vs reference"

    # --- train path (p > 0): exercise the dropout kernel variant ------------
    # TODO(synk): dropout uses a counter-hash PRNG, so the mask will not
    #             bit-match torch's RNG; inverted-dropout semantics are identical.
    out_d = jax.block_until_ready(net_forward(x, params, p=0.5, seed=123))
    assert out_d.shape == (B, out_size)
    assert bool(jnp.all(jnp.isfinite(out_d)))
    # dropout should actually change the result
    assert not bool(jnp.allclose(out_d, out, atol=1e-5))

    print("KERNEL_OK")
</pallas_src>

<mosaic_0001>
module attributes {stable_mosaic.version = 11 : i64} {
  func.func @_mlp_kernel_infer(%arg0: i32, %arg1: memref<32x128xf32, #tpu.memory_space<vmem>>, %arg2: memref<128x256xbf16, #tpu.memory_space<vmem>>, %arg3: memref<1x256xf32, #tpu.memory_space<vmem>>, %arg4: memref<256x256xbf16, #tpu.memory_space<vmem>>, %arg5: memref<1x256xf32, #tpu.memory_space<vmem>>, %arg6: memref<256x128xbf16, #tpu.memory_space<vmem>>, %arg7: memref<1x128xf32, #tpu.memory_space<vmem>>, %arg8: memref<32x128xf32, #tpu.memory_space<vmem>>) attributes {dimension_semantics = [#tpu.dimension_semantics<parallel>], iteration_bounds = array<i64: 2>, scalar_prefetch = 0 : i64, scratch_operands = 0 : i64, tpu.core_type = #tpu.core_type<tc>, window_params = [{transform_indices = @transform_0, window_bounds = array<i64: 32, 128>}, {pipeline_mode = #tpu.pipeline_mode<synchronous>, transform_indices = @transform_1, window_bounds = array<i64: 128, 256>}, {pipeline_mode = #tpu.pipeline_mode<synchronous>, transform_indices = @transform_2, window_bounds = array<i64: 1, 256>}, {pipeline_mode = #tpu.pipeline_mode<synchronous>, transform_indices = @transform_3, window_bounds = array<i64: 256, 256>}, {pipeline_mode = #tpu.pipeline_mode<synchronous>, transform_indices = @transform_4, window_bounds = array<i64: 1, 256>}, {pipeline_mode = #tpu.pipeline_mode<synchronous>, transform_indices = @transform_5, window_bounds = array<i64: 256, 128>}, {pipeline_mode = #tpu.pipeline_mode<synchronous>, transform_indices = @transform_6, window_bounds = array<i64: 1, 128>}, {transform_indices = @transform_7, window_bounds = array<i64: 32, 128>}]} {
    %c0 = arith.constant 0 : index
    %c0_0 = arith.constant 0 : index
    %0 = vector.load %arg1[%c0, %c0_0] : memref<32x128xf32, #tpu.memory_space<vmem>>, vector<32x128xf32>
    %1 = arith.truncf %0 : vector<32x128xf32> to vector<32x128xbf16>
    %c0_1 = arith.constant 0 : index
    %c0_2 = arith.constant 0 : index
    %2 = vector.load %arg2[%c0_1, %c0_2] : memref<128x256xbf16, #tpu.memory_space<vmem>>, vector<128x256xbf16>
    %cst = arith.constant dense<0.000000e+00> : vector<32x256xf32>
    %3 = tpu.matmul %1, %2, %cst {dimension_numbers = #tpu.dot_dimension_numbers<[1], [0], [0], [1], [0, 0, 1, 1], [], []>} : vector<32x128xbf16>, vector<128x256xbf16>, vector<32x256xf32> -> vector<32x256xf32>
    %c0_3 = arith.constant 0 : index
    %c0_4 = arith.constant 0 : index
    %4 = vector.load %arg3[%c0_3, %c0_4] : memref<1x256xf32, #tpu.memory_space<vmem>>, vector<1x256xf32>
    %5 = vector.broadcast %4 : vector<1x256xf32> to vector<32x256xf32>
    %6 = arith.addf %3, %5 : vector<32x256xf32>
    %cst_5 = arith.constant 0.000000e+00 : f32
    %7 = vector.broadcast %cst_5 : f32 to vector<32x256xf32>
    %8 = arith.maximumf %6, %7 : vector<32x256xf32>
    %9 = arith.truncf %8 : vector<32x256xf32> to vector<32x256xbf16>
    %c0_6 = arith.constant 0 : index
    %c0_7 = arith.constant 0 : index
    %10 = vector.load %arg4[%c0_6, %c0_7] : memref<256x256xbf16, #tpu.memory_space<vmem>>, vector<256x256xbf16>
    %cst_8 = arith.constant dense<0.000000e+00> : vector<32x256xf32>
    %11 = tpu.matmul %9, %10, %cst_8 {dimension_numbers = #tpu.dot_dimension_numbers<[1], [0], [0], [1], [0, 0, 1, 1], [], []>} : vector<32x256xbf16>, vector<256x256xbf16>, vector<32x256xf32> -> vector<32x256xf32>
    %c0_9 = arith.constant 0 : index
    %c0_10 = arith.constant 0 : index
    %12 = vector.load %arg5[%c0_9, %c0_10] : memref<1x256xf32, #tpu.memory_space<vmem>>, vector<1x256xf32>
    %13 = vector.broadcast %12 : vector<1x256xf32> to vector<32x256xf32>
    %14 = arith.addf %11, %13 : vector<32x256xf32>
    %cst_11 = arith.constant 0.000000e+00 : f32
    %15 = vector.broadcast %cst_11 : f32 to vector<32x256xf32>
    %16 = arith.maximumf %14, %15 : vector<32x256xf32>
    %17 = arith.truncf %16 : vector<32x256xf32> to vector<32x256xbf16>
    %c0_12 = arith.constant 0 : index
    %c0_13 = arith.constant 0 : index
    %18 = vector.load %arg6[%c0_12, %c0_13] : memref<256x128xbf16, #tpu.memory_space<vmem>>, vector<256x128xbf16>
    %cst_14 = arith.constant dense<0.000000e+00> : vector<32x128xf32>
    %19 = tpu.matmul %17, %18, %cst_14 {dimension_numbers = #tpu.dot_dimension_numbers<[1], [0], [0], [1], [0, 0, 1, 1], [], []>} : vector<32x256xbf16>, vector<256x128xbf16>, vector<32x128xf32> -> vector<32x128xf32>
    %c0_15 = arith.constant 0 : index
    %c0_16 = arith.constant 0 : index
    %20 = vector.load %arg7[%c0_15, %c0_16] : memref<1x128xf32, #tpu.memory_space<vmem>>, vector<1x128xf32>
    %21 = vector.broadcast %20 : vector<1x128xf32> to vector<32x128xf32>
    %22 = arith.addf %19, %21 : vector<32x128xf32>
    %c0_17 = arith.constant 0 : index
    %c0_18 = arith.constant 0 : index
    %23 = vector.load %arg8[%c0_17, %c0_18] : memref<32x128xf32, #tpu.memory_space<vmem>>, vector<32x128xf32>
    tpu.vector_store %arg8[%c0_17, %c0_18], %22 {strides = array<i32>} : memref<32x128xf32, #tpu.memory_space<vmem>>, vector<32x128xf32>,
    return
  }
  func.func @transform_0(%arg0: i32) -> (i32, i32) {
    %c0_i32 = arith.constant 0 : i32
    %c0_i32_0 = arith.constant 0 : i32
    return %arg0, %c0_i32 : i32, i32
  }
  func.func @transform_1(%arg0: i32) -> (i32, i32) {
    %c0_i32 = arith.constant 0 : i32
    %c0_i32_0 = arith.constant 0 : i32
    %c0_i32_1 = arith.constant 0 : i32
    return %c0_i32, %c0_i32_0 : i32, i32
  }
  func.func @transform_2(%arg0: i32) -> (i32, i32) {
    %c0_i32 = arith.constant 0 : i32
    %c0_i32_0 = arith.constant 0 : i32
    %c0_i32_1 = arith.constant 0 : i32
    return %c0_i32, %c0_i32_0 : i32, i32
  }
  func.func @transform_3(%arg0: i32) -> (i32, i32) {
    %c0_i32 = arith.constant 0 : i32
    %c0_i32_0 = arith.constant 0 : i32
    %c0_i32_1 = arith.constant 0 : i32
    return %c0_i32, %c0_i32_0 : i32, i32
  }
  func.func @transform_4(%arg0: i32) -> (i32, i32) {
    %c0_i32 = arith.constant 0 : i32
    %c0_i32_0 = arith.constant 0 : i32
    %c0_i32_1 = arith.constant 0 : i32
    return %c0_i32, %c0_i32_0 : i32, i32
  }
  func.func @transform_5(%arg0: i32) -> (i32, i32) {
    %c0_i32 = arith.constant 0 : i32
    %c0_i32_0 = arith.constant 0 : i32
    %c0_i32_1 = arith.constant 0 : i32
    return %c0_i32, %c0_i32_0 : i32, i32
  }
  func.func @transform_6(%arg0: i32) -> (i32, i32) {
    %c0_i32 = arith.constant 0 : i32
    %c0_i32_0 = arith.constant 0 : i32
    %c0_i32_1 = arith.constant 0 : i32
    return %c0_i32, %c0_i32_0 : i32, i32
  }
  func.func @transform_7(%arg0: i32) -> (i32, i32) {
    %c0_i32 = arith.constant 0 : i32
    %c0_i32_0 = arith.constant 0 : i32
    return %arg0, %c0_i32 : i32, i32
  }
}

</mosaic_0001>

<llo_original>
// kernel: tpu_custom_call.1
$region0: #{tpu_custom_call.1}
  #allocation0 [shape = 'u32[]', space=smem, size = 0x4, offset = 0x4, fixed_abs, tag = 'smem constant byte address 0x4 - core index']
  #allocation1 [shape = 'u32[144,128]{1,0:T(1,128)}', space=vmem, size = 0x12000, scoped, tag = 'internal scratch']
  %s0 = inlined_call_operand.hbm [shape: f32[64,128], index: 0, kind: input, shape index: {}]
  %s1 = inlined_call_operand.hbm [shape: bf16[128,256], index: 1, kind: input, shape index: {}]
  %s2 = inlined_call_operand.vmem [shape: f32[1,256], index: 2, kind: input, shape index: {}]
  %s3 = inlined_call_operand.hbm [shape: bf16[256,256], index: 3, kind: input, shape index: {}]
  %s4 = inlined_call_operand.vmem [shape: f32[1,256], index: 4, kind: input, shape index: {}]
  %s5 = inlined_call_operand.hbm [shape: bf16[256,128], index: 5, kind: input, shape index: {}]
  %s6 = inlined_call_operand.vmem [shape: f32[1,128], index: 6, kind: input, shape index: {}]
  %s7 = inlined_call_operand.hbm [shape: f32[64,128], index: 7, kind: output, shape index: {}]
  %s8 = sld [smem:[#allocation0]]
  $region77: #{tpu_custom_call.1} parent=0
    _
  %s10 = ssub.s32 1, %s8
  %s11 = scalar_select 0, %s10, %s8
  $region1: #{tpu_custom_call.1} parent=0
    #allocation2 [shape = 'u8[32768]{0}', space=vmem, size = 0x8000, scoped, tag = 'input window, operand 0']
    #allocation3 [shape = 's32[2]{0}', space=sflag, size = 0x8, scoped, tag = 'scoped memory for tpu_custom_call.1']
    #allocation4 [shape = 's32[2]{0}', space=sflag, size = 0x8, scoped, tag = 'scoped memory for tpu_custom_call.1']
    #allocation5 [shape = 'u8[65536]{0}', space=vmem, size = 0x10000, scoped, tag = 'input window, operand 1, single buffered']
    #allocation6 [shape = 's32[1]{0}', space=sflag, size = 0x4, scoped, tag = 'scoped memory for tpu_custom_call.1']
    #allocation7 [shape = 'u8[131072]{0}', space=vmem, size = 0x20000, scoped, tag = 'input window, operand 3, single buffered']
    #allocation8 [shape = 'u8[65536]{0}', space=vmem, size = 0x10000, scoped, tag = 'input window, operand 5, single buffered']
    #allocation9 [shape = 's32[1]{0}', space=sflag, size = 0x4, scoped, tag = 'scoped memory for tpu_custom_call.1']
    #allocation10 [shape = 'u8[32768]{0}', space=vmem, size = 0x8000, scoped, tag = 'output window, operand 0']
    %12 = vsyncpa [#allocation3], 0
    %s13 = scalar_lea.sflag [#allocation3], 1
    %14 = vsyncpa %s13, 0
    %15 = vsyncpa [#allocation6], 0
    %16 = vsyncpa [#allocation9], 0
    %17 = vsyncpa [#allocation4], 0
    %s18 = scalar_lea.sflag [#allocation4], 1
    %19 = vsyncpa %s18, 0
    loop: start=0, step=1, limit=4
    $region2: #{tpu_custom_call.1} parent=1 // loop_pre_header
      _
    $region3: #{tpu_custom_call.1} parent=1 // loop_header
      %s21 = sphi 0, %s25
      %p22 = scmp.ge.s32.totalorder %s21, 4
      %s31 = sphi 0, %s33
      %s34 = sphi 0, %s31
      %s35 = sphi 0, %s34
      %s51 = sphi 0, %s35
      %s55 = sphi 0, %s55
      %s57 = sphi 0, %s55
      %s58 = sphi 0, %s57
      %s72 = sphi 0, %s58
      %s76 = sphi 0, %s76
      %s78 = sphi 0, %s76
      %s79 = sphi 0, %s78
      %s93 = sphi 0, %s79
      %s97 = sphi 0, %s97
      %s99 = sphi 0, %s97
      %s100 = sphi 0, %s99
      %s114 = sphi 0, %s100
      %s118 = sphi 0, %s118
      %s120 = sphi 0, %s118
      %s121 = sphi 0, %s120
      %s135 = sphi 0, %s121
      %s139 = sphi 0, %s139
      %s141 = sphi 0, %s139
      %s142 = sphi 0, %s141
      %s156 = sphi 0, %s142
      %s160 = sphi 0, %s160
      %s162 = sphi 0, %s160
      %s163 = sphi 0, %s162
      %s177 = sphi 0, %s163
      %s183 = sphi 0, %s185
      %s186 = sphi 0, %s183
      %s187 = sphi 0, %s186
      %s203 = sphi 0, %s187
    $region4: #{tpu_custom_call.1} parent=1 // loop_header_branch
      %24 = sbr.rel (%p22) target = $region8
    $region5: #{tpu_custom_call.1} parent=1 // loop_body
      %s26 = ssub.s32 %s21, 1
      %s27 = ssub.s32 %s21, 2
      %s28 = sadd.s32 %s21, 1
      %s29 = ssub.s32 %s21, %s28
      %p30 = scmp.eq.s32.totalorder %s29, 0
      %s32 = sadd.s32 %s31, 1
      %s33 = scalar_select %p30, %s31, %s32
      %p36 = pneg %p30
      %p37 = scmp.eq.s32.totalorder %s21, 1
      %p38 = por %p36, %p37
      %p39 = scmp.ne.s32.totalorder %s31, %s34
      %p40 = scmp.eq.s32.totalorder %s21, 0
      %p41 = por %p39, %p40
      %p42 = scmp.ne.s32.totalorder %s31, %s34
      %p43 = scmp.eq.s32.totalorder %s26, 1
      %p44 = por %p42, %p43
      %p45 = scmp.ne.s32.totalorder %s34, %s35
      %p46 = scmp.eq.s32.totalorder %s26, 0
      %p47 = por %p45, %p46
      %p48 = scmp.ne.s32.totalorder %s34, %s35
      %p49 = scmp.eq.s32.totalorder %s27, 1
      %p50 = por %p48, %p49
      %p52 = scmp.ne.s32.totalorder %s35, %s51
      %p53 = scmp.eq.s32.totalorder %s27, 0
      %p54 = por %p52, %p53
      %s56 = sadd.s32 %s55, 1
      %p59 = scmp.eq.s32.totalorder %s21, 1
      %p60 = scmp.ne.s32.totalorder %s55, %s57
      %p61 = scmp.eq.s32.totalorder %s21, 0
      %p62 = por %p60, %p61
      %p63 = scmp.ne.s32.totalorder %s55, %s57
      %p64 = scmp.eq.s32.totalorder %s26, 1
      %p65 = por %p63, %p64
      %p66 = scmp.ne.s32.totalorder %s57, %s58
      %p67 = scmp.eq.s32.totalorder %s26, 0
      %p68 = por %p66, %p67
      %p69 = scmp.ne.s32.totalorder %s57, %s58
      %p70 = scmp.eq.s32.totalorder %s27, 1
      %p71 = por %p69, %p70
      %p73 = scmp.ne.s32.totalorder %s58, %s72
      %p74 = scmp.eq.s32.totalorder %s27, 0
      %p75 = por %p73, %p74
      %s77 = sadd.s32 %s76, 1
      %p80 = scmp.eq.s32.totalorder %s21, 1
      %p81 = scmp.ne.s32.totalorder %s76, %s78
      %p82 = scmp.eq.s32.totalorder %s21, 0
      %p83 = por %p81, %p82
      %p84 = scmp.ne.s32.totalorder %s76, %s78
      %p85 = scmp.eq.s32.totalorder %s26, 1
      %p86 = por %p84, %p85
      %p87 = scmp.ne.s32.totalorder %s78, %s79
      %p88 = scmp.eq.s32.totalorder %s26, 0
      %p89 = por %p87, %p88
      %p90 = scmp.ne.s32.totalorder %s78, %s79
      %p91 = scmp.eq.s32.totalorder %s27, 1
      %p92 = por %p90, %p91
      %p94 = scmp.ne.s32.totalorder %s79, %s93
      %p95 = scmp.eq.s32.totalorder %s27, 0
      %p96 = por %p94, %p95
      %s98 = sadd.s32 %s97, 1
      %p101 = scmp.eq.s32.totalorder %s21, 1
      %p102 = scmp.ne.s32.totalorder %s97, %s99
      %p103 = scmp.eq.s32.totalorder %s21, 0
      %p104 = por %p102, %p103
      %p105 = scmp.ne.s32.totalorder %s97, %s99
      %p106 = scmp.eq.s32.totalorder %s26, 1
      %p107 = por %p105, %p106
      %p108 = scmp.ne.s32.totalorder %s99, %s100
      %p109 = scmp.eq.s32.totalorder %s26, 0
      %p110 = por %p108, %p109
      %p111 = scmp.ne.s32.totalorder %s99, %s100
      %p112 = scmp.eq.s32.totalorder %s27, 1
      %p113 = por %p111, %p112
      %p115 = scmp.ne.s32.totalorder %s100, %s114
      %p116 = scmp.eq.s32.totalorder %s27, 0
      %p117 = por %p115, %p116
      %s119 = sadd.s32 %s118, 1
      %p122 = scmp.eq.s32.totalorder %s21, 1
      %p123 = scmp.ne.s32.totalorder %s118, %s120
      %p124 = scmp.eq.s32.totalorder %s21, 0
      %p125 = por %p123, %p124
      %p126 = scmp.ne.s32.totalorder %s118, %s120
      %p127 = scmp.eq.s32.totalorder %s26, 1
      %p128 = por %p126, %p127
      %p129 = scmp.ne.s32.totalorder %s120, %s121
      %p130 = scmp.eq.s32.totalorder %s26, 0
      %p131 = por %p129, %p130
      %p132 = scmp.ne.s32.totalorder %s120, %s121
      %p133 = scmp.eq.s32.totalorder %s27, 1
      %p134 = por %p132, %p133
      %p136 = scmp.ne.s32.totalorder %s121, %s135
      %p137 = scmp.eq.s32.totalorder %s27, 0
      %p138 = por %p136, %p137
      %s140 = sadd.s32 %s139, 1
      %p143 = scmp.eq.s32.totalorder %s21, 1
      %p144 = scmp.ne.s32.totalorder %s139, %s141
      %p145 = scmp.eq.s32.totalorder %s21, 0
      %p146 = por %p144, %p145
      %p147 = scmp.ne.s32.totalorder %s139, %s141
      %p148 = scmp.eq.s32.totalorder %s26, 1
      %p149 = por %p147, %p148
      %p150 = scmp.ne.s32.totalorder %s141, %s142
      %p151 = scmp.eq.s32.totalorder %s26, 0
      %p152 = por %p150, %p151
      %p153 = scmp.ne.s32.totalorder %s141, %s142
      %p154 = scmp.eq.s32.totalorder %s27, 1
      %p155 = por %p153, %p154
      %p157 = scmp.ne.s32.totalorder %s142, %s156
      %p158 = scmp.eq.s32.totalorder %s27, 0
      %p159 = por %p157, %p158
      %s161 = sadd.s32 %s160, 1
      %p164 = scmp.eq.s32.totalorder %s21, 1
      %p165 = scmp.ne.s32.totalorder %s160, %s162
      %p166 = scmp.eq.s32.totalorder %s21, 0
      %p167 = por %p165, %p166
      %p168 = scmp.ne.s32.totalorder %s160, %s162
      %p169 = scmp.eq.s32.totalorder %s26, 1
      %p170 = por %p168, %p169
      %p171 = scmp.ne.s32.totalorder %s162, %s163
      %p172 = scmp.eq.s32.totalorder %s26, 0
      %p173 = por %p171, %p172
      %p174 = scmp.ne.s32.totalorder %s162, %s163
      %p175 = scmp.eq.s32.totalorder %s27, 1
      %p176 = por %p174, %p175
      %p178 = scmp.ne.s32.totalorder %s163, %s177
      %p179 = scmp.eq.s32.totalorder %s27, 0
      %p180 = por %p178, %p179
      %s181 = ssub.s32 %s21, %s28
      %p182 = scmp.eq.s32.totalorder %s181, 0
      %s184 = sadd.s32 %s183, 1
      %s185 = scalar_select %p182, %s183, %s184
      %p188 = pneg %p182
      %p189 = scmp.eq.s32.totalorder %s21, 1
      %p190 = por %p188, %p189
      %p191 = scmp.ne.s32.totalorder %s183, %s186
      %p192 = scmp.eq.s32.totalorder %s21, 0
      %p193 = por %p191, %p192
      %p194 = scmp.ne.s32.totalorder %s183, %s186
      %p195 = scmp.eq.s32.totalorder %s26, 1
      %p196 = por %p194, %p195
      %p197 = scmp.ne.s32.totalorder %s186, %s187
      %p198 = scmp.eq.s32.totalorder %s26, 0
      %p199 = por %p197, %p198
      %p200 = scmp.ne.s32.totalorder %s186, %s187
      %p201 = scmp.eq.s32.totalorder %s27, 1
      %p202 = por %p200, %p201
      %p204 = scmp.ne.s32.totalorder %s187, %s203
      %p205 = scmp.eq.s32.totalorder %s27, 0
      %p206 = por %p204, %p205
      %p207 = scmp.le.s32.totalorder 1, %s21
      %p208 = scmp.lt.s32.totalorder %s21, 3
      %p209 = pnand %p207, %p208
      %p210 = pneg %p209
      // Predicated region
      $region9: #{tpu_custom_call.1} parent=5 // pred_check
        _
      $region10: #{tpu_custom_call.1} parent=5 // pred_check_branch
        %212 = sbr.rel (%p209) target = $region12
      $region11: #{tpu_custom_call.1} parent=5 // pred_region
        %s213 = ssub.s32 %s21, 1
        // Predicated region
        $region13: #{tpu_custom_call.1} parent=11 // pred_check
          %p214 = pneg %p68
        $region14: #{tpu_custom_call.1} parent=11 // pred_check_branch
          %216 = sbr.rel (%p214) target = $region16
        $region15: #{tpu_custom_call.1} parent=11 // pred_region
          %s218 = ssub.s32 2048, 2048
          %219 = vsyncadd [#allocation6], %s218
          %s220 = sshll.u32 [#allocation5], 4
          %s221 = int_to_ptr.vmem [resolvable:$true] %s220
          %226 = dma.hbm_to_vmem [thread:$0]  %s1, 2048, %s221, [#allocation6], 128, 128, 8
        $region16: #{tpu_custom_call.1} parent=11 // pred_fallthru
          _
        // Predicated region
        $region17: #{tpu_custom_call.1} parent=11 // pred_check
          %p227 = pneg %p89
        $region18: #{tpu_custom_call.1} parent=11 // pred_check_branch
          %229 = sbr.rel (%p227) target = $region20
        $region19: #{tpu_custom_call.1} parent=11 // pred_region
          _
        $region20: #{tpu_custom_call.1} parent=11 // pred_fallthru
          _
        // Predicated region
        $region21: #{tpu_custom_call.1} parent=11 // pred_check
          %p230 = pneg %p110
        $region22: #{tpu_custom_call.1} parent=11 // pred_check_branch
          %232 = sbr.rel (%p230) target = $region24
        $region23: #{tpu_custom_call.1} parent=11 // pred_region
          %s234 = ssub.s32 4096, 4096
          %235 = vsyncadd [#allocation6], %s234
          %s236 = sshll.u32 [#allocation7], 4
          %s237 = int_to_ptr.vmem [resolvable:$true] %s236
          %242 = dma.hbm_to_vmem [thread:$0]  %s3, 4096, %s237, [#allocation6], 128, 128, 8
        $region24: #{tpu_custom_call.1} parent=11 // pred_fallthru
          _
        // Predicated region
        $region25: #{tpu_custom_call.1} parent=11 // pred_check
          %p243 = pneg %p131
        $region26: #{tpu_custom_call.1} parent=11 // pred_check_branch
          %245 = sbr.rel (%p243) target = $region28
        $region27: #{tpu_custom_call.1} parent=11 // pred_region
          _
        $region28: #{tpu_custom_call.1} parent=11 // pred_fallthru
          _
        // Predicated region
        $region29: #{tpu_custom_call.1} parent=11 // pred_check
          %p246 = pneg %p152
        $region30: #{tpu_custom_call.1} parent=11 // pred_check_branch
          %248 = sbr.rel (%p246) target = $region32
        $region31: #{tpu_custom_call.1} parent=11 // pred_region
          %s250 = ssub.s32 2048, 2048
          %251 = vsyncadd [#allocation9], %s250
          %s252 = sshll.u32 [#allocation8], 4
          %s253 = int_to_ptr.vmem [resolvable:$true] %s252
          %258 = dma.hbm_to_vmem [thread:$0]  %s5, 2048, %s253, [#allocation9], 64, 64, 4
        $region32: #{tpu_custom_call.1} parent=11 // pred_fallthru
          _
        // Predicated region
        $region33: #{tpu_custom_call.1} parent=11 // pred_check
          %p259 = pneg %p173
        $region34: #{tpu_custom_call.1} parent=11 // pred_check_branch
          %261 = sbr.rel (%p259) target = $region36
        $region35: #{tpu_custom_call.1} parent=11 // pred_region
          _
        $region36: #{tpu_custom_call.1} parent=11 // pred_fallthru
          _
      $region12: #{tpu_custom_call.1} parent=5 // pred_fallthru
        _
      %p262 = scmp.lt.s32.totalorder %s21, 2
      // Predicated region
      $region37: #{tpu_custom_call.1} parent=5 // pred_check
        %p263 = pneg %p262
      $region38: #{tpu_custom_call.1} parent=5 // pred_check_branch
        %265 = sbr.rel (%p263) target = $region40
      $region39: #{tpu_custom_call.1} parent=5 // pred_region
        // Predicated region
        $region41: #{tpu_custom_call.1} parent=39 // pred_check
          %p266 = pneg %p41
        $region42: #{tpu_custom_call.1} parent=39 // pred_check_branch
          %268 = sbr.rel (%p266) target = $region44
        $region43: #{tpu_custom_call.1} parent=39 // pred_region
          %s269 = sand.u32 %s31, 1
          %s270 = scalar_lea.sflag [#allocation3], %s269
          %s271 = sand.u32 %s31, 1
          %s272 = smul.addr %s271, 32
          %s273 = scalar_lea.vmem [#allocation2], %s272
          %s274 = smul.u32 4, %s21
          %s276 = ssub.s32 512, 512
          %277 = vsyncadd %s270, %s276
          %s278 = smul.addr %s274, 128
          %s279 = scalar_lea.hbm %s0, %s278
          %s280 = sshll.u32 %s273, 4
          %s281 = int_to_ptr.vmem [resolvable:$true] %s280
          %286 = dma.hbm_to_vmem [thread:$0]  %s279, 512, %s281, %s270, 128, 128, 8
        $region44: #{tpu_custom_call.1} parent=39 // pred_fallthru
          _
      $region40: #{tpu_custom_call.1} parent=5 // pred_fallthru
        _
      %p287 = scmp.le.s32.totalorder 1, %s21
      %p288 = scmp.lt.s32.totalorder %s21, 3
      %p289 = pnand %p287, %p288
      %p290 = pneg %p289
      // Predicated region
      $region45: #{tpu_custom_call.1} parent=5 // pred_check
        _
      $region46: #{tpu_custom_call.1} parent=5 // pred_check_branch
        %292 = sbr.rel (%p289) target = $region48
      $region47: #{tpu_custom_call.1} parent=5 // pred_region
        %s293 = ssub.s32 %s21, 1
        %s294 = sand.u32 %s34, 1
        %s295 = scalar_lea.sflag [#allocation3], %s294
        %s296 = sand.u32 %s34, 1
        %s297 = smul.addr %s296, 32
        %s298 = scalar_lea.vmem [#allocation2], %s297
        // Predicated region
        $region49: #{tpu_custom_call.1} parent=47 // pred_check
          %p299 = pneg %p47
        $region50: #{tpu_custom_call.1} parent=47 // pred_check_branch
          %301 = sbr.rel (%p299) target = $region52
        $region51: #{tpu_custom_call.1} parent=47 // pred_region
          %302 = dma.done %s295, 512
        $region52: #{tpu_custom_call.1} parent=47 // pred_fallthru
          _
        // Predicated region
        $region53: #{tpu_custom_call.1} parent=47 // pred_check
          %p303 = pneg %p68
        $region54: #{tpu_custom_call.1} parent=47 // pred_check_branch
          %305 = sbr.rel (%p303) target = $region56
        $region55: #{tpu_custom_call.1} parent=47 // pred_region
          %306 = dma.done [#allocation6], 2048
        $region56: #{tpu_custom_call.1} parent=47 // pred_fallthru
          _
        // Predicated region
        $region57: #{tpu_custom_call.1} parent=47 // pred_check
          %p307 = pneg %p110
        $region58: #{tpu_custom_call.1} parent=47 // pred_check_branch
          %309 = sbr.rel (%p307) target = $region60
        $region59: #{tpu_custom_call.1} parent=47 // pred_region
          %310 = dma.done [#allocation6], 4096
        $region60: #{tpu_custom_call.1} parent=47 // pred_fallthru
          _
        // Predicated region
        $region61: #{tpu_custom_call.1} parent=47 // pred_check
          %p311 = pneg %p152
        $region62: #{tpu_custom_call.1} parent=47 // pred_check_branch
          %313 = sbr.rel (%p311) target = $region64
        $region63: #{tpu_custom_call.1} parent=47 // pred_region
          %314 = dma.done [#allocation9], 2048
        $region64: #{tpu_custom_call.1} parent=47 // pred_fallthru
          _
        %s315 = sand.u32 %s34, 1
        %s316 = scalar_lea.sflag [#allocation3], %s315
        %s317 = sand.u32 %s34, 1
        %s318 = smul.addr %s317, 32
        %s319 = scalar_lea.vmem [#allocation2], %s318
        %p320 = pneg %p47
        %p321 = pneg %p44
        %p322 = pneg %p68
        %p323 = pneg %p65
        %p324 = pneg %p89
        %p325 = pneg %p86
        %p326 = pneg %p110
        %p327 = pneg %p107
        %p328 = pneg %p131
        %p329 = pneg %p128
        %p330 = pneg %p152
        %p331 = pneg %p149
        %p332 = pneg %p173
        %p333 = pneg %p170
        %p334 = pneg %p199
        %p335 = pneg %p196
        %s336 = sand.u32 %s186, 1
        %s337 = scalar_lea.sflag [#allocation4], %s336
        %s338 = sand.u32 %s186, 1
        %s339 = smul.addr %s338, 32
        %s340 = scalar_lea.vmem [#allocation10], %s339
        %s341 = smul.u32 4, %s26
        %s342 = smul.u32 4, %s26
        %v344 = vld [vmem:[%s298] sm:$0xff]
        %v345 = vld [vmem:[%s298 + $0x8] sm:$0xff]
        %v346 = vld [vmem:[%s298 + $0x10] sm:$0xff]
        %v347 = vld [vmem:[%s298 + $0x18] sm:$0xff]
        %v348 = vpack.c.bf16 %v345, %v344
        %v349 = vpack.c.bf16 %v347, %v346
        %v350 = vld [vmem:[#allocation5] sm:$0xff]
        %v351 = vld [vmem:[#allocation5 + $0x8] sm:$0xff]
        %v352 = vld [vmem:[#allocation5 + $0x10] sm:$0xff]
        %v353 = vld [vmem:[#allocation5 + $0x18] sm:$0xff]
        %v354 = vld [vmem:[#allocation5 + $0x20] sm:$0xff]
        %v355 = vld [vmem:[#allocation5 + $0x28] sm:$0xff]
        %v356 = vld [vmem:[#allocation5 + $0x30] sm:$0xff]
        %v357 = vld [vmem:[#allocation5 + $0x38] sm:$0xff]
        %v358 = vld [vmem:[#allocation5 + $0x40] sm:$0xff]
        %v359 = vld [vmem:[#allocation5 + $0x48] sm:$0xff]
        %v360 = vld [vmem:[#allocation5 + $0x50] sm:$0xff]
        %v361 = vld [vmem:[#allocation5 + $0x58] sm:$0xff]
        %v362 = vld [vmem:[#allocation5 + $0x60] sm:$0xff]
        %v363 = vld [vmem:[#allocation5 + $0x68] sm:$0xff]
        %v364 = vld [vmem:[#allocation5 + $0x70] sm:$0xff]
        %v365 = vld [vmem:[#allocation5 + $0x78] sm:$0xff]
        %v366 = vld [vmem:[%s2] sm:$0x3]
        %v368 = vlaneseq
        %v369 = vshrl.u32 %v368, 7
        %v370 = vsub.s32 0, %v369
        %v371 = vrot.slane %v366, %v370
        %v372 = vlaneseq
        %v373 = vshrl.u32 %v372, 7
        %v374 = vsub.s32 1, %v373
        %v375 = vrot.slane %v366, %v374
        %v394 = vunpack.c.l.b16 %v350
        %v395 = vunpack.c.h.b16 %v350
        %v396 = vunpack.c.l.b16 %v351
        %v397 = vunpack.c.h.b16 %v351
        %v398 = vunpack.c.l.b16 %v352
        %v399 = vunpack.c.h.b16 %v352
        %v400 = vunpack.c.l.b16 %v353
        %v401 = vunpack.c.h.b16 %v353
        %v402 = vunpack.c.l.b16 %v354
        %v403 = vunpack.c.h.b16 %v354
        %v404 = vunpack.c.l.b16 %v355
        %v405 = vunpack.c.h.b16 %v355
        %v406 = vunpack.c.l.b16 %v356
        %v407 = vunpack.c.h.b16 %v356
        %v408 = vunpack.c.l.b16 %v357
        %v409 = vunpack.c.h.b16 %v357
        %v410 = vunpack.c.l.b16 %v358
        %v411 = vunpack.c.h.b16 %v358
        %v412 = vunpack.c.l.b16 %v359
        %v413 = vunpack.c.h.b16 %v359
        %v414 = vunpack.c.l.b16 %v360
        %v415 = vunpack.c.h.b16 %v360
        %v416 = vunpack.c.l.b16 %v361
        %v417 = vunpack.c.h.b16 %v361
        %v418 = vunpack.c.l.b16 %v362
        %v419 = vunpack.c.h.b16 %v362
        %v420 = vunpack.c.l.b16 %v363
        %v421 = vunpack.c.h.b16 %v363
        %v422 = vunpack.c.l.b16 %v364
        %v423 = vunpack.c.h.b16 %v364
        %v424 = vunpack.c.l.b16 %v365
        %v425 = vunpack.c.h.b16 %v365
        %v426 = vpack.c.b16 %v396, %v394
        %v427 = vpack.c.b16 %v397, %v395
        %v428 = vpack.c.b16 %v400, %v398
        %v429 = vpack.c.b16 %v401, %v399
        %v430 = vpack.c.b16 %v404, %v402
        %v431 = vpack.c.b16 %v405, %v403
        %v432 = vpack.c.b16 %v408, %v406
        %v433 = vpack.c.b16 %v409, %v407
        %v434 = vpack.c.b16 %v412, %v410
        %v435 = vpack.c.b16 %v413, %v411
        %v436 = vpack.c.b16 %v416, %v414
        %v437 = vpack.c.b16 %v417, %v415
        %v438 = vpack.c.b16 %v420, %v418
        %v439 = vpack.c.b16 %v421, %v419
        %v440 = vpack.c.b16 %v424, %v422
        %v441 = vpack.c.b16 %v425, %v423
        %458 = vmatprep.subr.bf16.mxu0 %v427
        %459 = vmatpush1.bf16.msra.mxu0 %v426
        %460 = vmatprep.subr.bf16.mxu0 %v429
        %461 = vmatpush1.bf16.msra.mxu0 %v428
        %462 = vmatprep.subr.bf16.mxu0 %v431
        %463 = vmatpush1.bf16.msra.mxu0 %v430
        %464 = vmatprep.subr.bf16.mxu0 %v433
        %465 = vmatpush1.bf16.msra.mxu0 %v432
        %466 = vmatprep.subr.bf16.mxu0 %v435
        %467 = vmatpush1.bf16.msra.mxu0 %v434
        %468 = vmatprep.subr.bf16.mxu0 %v437
        %469 = vmatpush1.bf16.msra.mxu0 %v436
        %470 = vmatprep.subr.bf16.mxu0 %v439
        %471 = vmatpush1.bf16.msra.mxu0 %v438
        %472 = vmatprep.subr.bf16.mxu0 %v441
        %473 = vmatpush1.bf16.msra.mxu0 %v440
        %474 = vmatprep.subr.bf16.mxu0 0
        %475 = vmatpush1.bf16.msra.mxu0 0
        %476 = vmatprep.subr.bf16.mxu0 0
        %477 = vmatpush1.bf16.msra.mxu0 0
        %478 = vmatprep.subr.bf16.mxu0 0
        %479 = vmatpush1.bf16.msra.mxu0 0
        %480 = vmatprep.subr.bf16.mxu0 0
        %481 = vmatpush1.bf16.msra.mxu0 0
        %482 = vmatprep.subr.bf16.mxu0 0
        %483 = vmatpush1.bf16.msra.mxu0 0
        %484 = vmatprep.subr.bf16.mxu0 0
        %485 = vmatpush1.bf16.msra.mxu0 0
        %486 = vmatprep.subr.bf16.mxu0 0
        %487 = vmatpush1.bf16.msra.mxu0 0
        %488 = vmatprep.subr.bf16.mxu0 0
        %489 = vmatpush1.bf16.msra.mxu0 0
        %490 = vmatprep.mubr.bf16.mxu0 0
        %491 = vmatmul.mubr.bf16.gmra.mrb[0].mxu0 %v348
        %v492 = vpop.f32.mrb[0].mxu0
        %v493 = vadd.f32 %v371, %v492
        %v494 = vpop.f32.mrb[0].mxu0
        %v495 = vadd.f32 %v375, %v494
        %v496 = vpop.f32.mrb[0].mxu0
        %v497 = vadd.f32 %v371, %v496
        %v498 = vpop.f32.mrb[0].mxu0
        %v499 = vadd.f32 %v375, %v498
        %500 = vmatprep.mubr.bf16.mxu0 0
        %501 = vmatmul.mubr.bf16.gmra.mrb[0].mxu0 %v349
        %v502 = vpop.f32.mrb[0].mxu0
        %v503 = vadd.f32 %v371, %v502
        %v504 = vpop.f32.mrb[0].mxu0
        %v505 = vadd.f32 %v375, %v504
        %v506 = vpop.f32.mrb[0].mxu0
        %v507 = vadd.f32 %v371, %v506
        %v508 = vpop.f32.mrb[0].mxu0
        %v509 = vadd.f32 %v375, %v508
        %510 = vdwg.mxu0
        %v511 = vmax.f32 %v493, 0.0
        %v512 = vmax.f32 %v495, 0.0
        %v513 = vmax.f32 %v497, 0.0
        %v514 = vmax.f32 %v499, 0.0
        %v515 = vmax.f32 %v503, 0.0
        %v516 = vmax.f32 %v505, 0.0
        %v517 = vmax.f32 %v507, 0.0
        %v518 = vmax.f32 %v509, 0.0
        %v519 = vpack.c.bf16 %v513, %v511
        %v520 = vpack.c.bf16 %v514, %v512
        %v521 = vpack.c.bf16 %v517, %v515
        %v522 = vpack.c.bf16 %v518, %v516
        %v523 = vld [vmem:[#allocation7] sm:$0xff]
        %v524 = vld [vmem:[#allocation7 + $0x8] sm:$0xff]
        %v525 = vld [vmem:[#allocation7 + $0x10] sm:$0xff]
        %v526 = vld [vmem:[#allocation7 + $0x18] sm:$0xff]
        %v527 = vld [vmem:[#allocation7 + $0x20] sm:$0xff]
        %v528 = vld [vmem:[#allocation7 + $0x28] sm:$0xff]
        %v529 = vld [vmem:[#allocation7 + $0x30] sm:$0xff]
        %v530 = vld [vmem:[#allocation7 + $0x38] sm:$0xff]
        %v531 = vld [vmem:[#allocation7 + $0x40] sm:$0xff]
        %v532 = vld [vmem:[#allocation7 + $0x48] sm:$0xff]
        %v533 = vld [vmem:[#allocation7 + $0x50] sm:$0xff]
        %v534 = vld [vmem:[#allocation7 + $0x58] sm:$0xff]
        %v535 = vld [vmem:[#allocation7 + $0x60] sm:$0xff]
        %v536 = vld [vmem:[#allocation7 + $0x68] sm:$0xff]
        %v537 = vld [vmem:[#allocation7 + $0x70] sm:$0xff]
        %v538 = vld [vmem:[#allocation7 + $0x78] sm:$0xff]
        %v539 = vld [vmem:[#allocation7 + $0x80] sm:$0xff]
        %v540 = vld [vmem:[#allocation7 + $0x88] sm:$0xff]
        %v541 = vld [vmem:[#allocation7 + $0x90] sm:$0xff]
        %v542 = vld [vmem:[#allocation7 + $0x98] sm:$0xff]
        %v543 = vld [vmem:[#allocation7 + $0xa0] sm:$0xff]
        %v544 = vld [vmem:[#allocation7 + $0xa8] sm:$0xff]
        %v545 = vld [vmem:[#allocation7 + $0xb0] sm:$0xff]
        %v546 = vld [vmem:[#allocation7 + $0xb8] sm:$0xff]
        %v547 = vld [vmem:[#allocation7 + $0xc0] sm:$0xff]
        %v548 = vld [vmem:[#allocation7 + $0xc8] sm:$0xff]
        %v549 = vld [vmem:[#allocation7 + $0xd0] sm:$0xff]
        %v550 = vld [vmem:[#allocation7 + $0xd8] sm:$0xff]
        %v551 = vld [vmem:[#allocation7 + $0xe0] sm:$0xff]
        %v552 = vld [vmem:[#allocation7 + $0xe8] sm:$0xff]
        %v553 = vld [vmem:[#allocation7 + $0xf0] sm:$0xff]
        %v554 = vld [vmem:[#allocation7 + $0xf8] sm:$0xff]
        %v555 = vld [vmem:[%s4] sm:$0x3]
        %v557 = vlaneseq
        %v558 = vshrl.u32 %v557, 7
        %v559 = vsub.s32 0, %v558
        %v560 = vrot.slane %v555, %v559
        %v561 = vlaneseq
        %v562 = vshrl.u32 %v561, 7
        %v563 = vsub.s32 1, %v562
        %v564 = vrot.slane %v555, %v563
        %v599 = vunpack.c.l.b16 %v523
        %v600 = vunpack.c.h.b16 %v523
        %v601 = vunpack.c.l.b16 %v524
        %v602 = vunpack.c.h.b16 %v524
        %v603 = vunpack.c.l.b16 %v525
        %v604 = vunpack.c.h.b16 %v525
        %v605 = vunpack.c.l.b16 %v526
        %v606 = vunpack.c.h.b16 %v526
        %v607 = vunpack.c.l.b16 %v527
        %v608 = vunpack.c.h.b16 %v527
        %v609 = vunpack.c.l.b16 %v528
        %v610 = vunpack.c.h.b16 %v528
        %v611 = vunpack.c.l.b16 %v529
        %v612 = vunpack.c.h.b16 %v529
        %v613 = vunpack.c.l.b16 %v530
        %v614 = vunpack.c.h.b16 %v530
        %v615 = vunpack.c.l.b16 %v531
        %v616 = vunpack.c.h.b16 %v531
        %v617 = vunpack.c.l.b16 %v532
        %v618 = vunpack.c.h.b16 %v532
        %v619 = vunpack.c.l.b16 %v533
        %v620 = vunpack.c.h.b16 %v533
        %v621 = vunpack.c.l.b16 %v534
        %v622 = vunpack.c.h.b16 %v534
        %v623 = vunpack.c.l.b16 %v535
        %v624 = vunpack.c.h.b16 %v535
        %v625 = vunpack.c.l.b16 %v536
        %v626 = vunpack.c.h.b16 %v536
        %v627 = vunpack.c.l.b16 %v537
        %v628 = vunpack.c.h.b16 %v537
        %v629 = vunpack.c.l.b16 %v538
        %v630 = vunpack.c.h.b16 %v538
        %v631 = vunpack.c.l.b16 %v539
        %v632 = vunpack.c.h.b16 %v539
        %v633 = vunpack.c.l.b16 %v540
        %v634 = vunpack.c.h.b16 %v540
        %v635 = vunpack.c.l.b16 %v541
        %v636 = vunpack.c.h.b16 %v541
        %v637 = vunpack.c.l.b16 %v542
        %v638 = vunpack.c.h.b16 %v542
        %v639 = vunpack.c.l.b16 %v543
        %v640 = vunpack.c.h.b16 %v543
        %v641 = vunpack.c.l.b16 %v544
        %v642 = vunpack.c.h.b16 %v544
        %v643 = vunpack.c.l.b16 %v545
        %v644 = vunpack.c.h.b16 %v545
        %v645 = vunpack.c.l.b16 %v546
        %v646 = vunpack.c.h.b16 %v546
        %v647 = vunpack.c.l.b16 %v547
        %v648 = vunpack.c.h.b16 %v547
        %v649 = vunpack.c.l.b16 %v548
        %v650 = vunpack.c.h.b16 %v548
        %v651 = vunpack.c.l.b16 %v549
        %v652 = vunpack.c.h.b16 %v549
        %v653 = vunpack.c.l.b16 %v550
        %v654 = vunpack.c.h.b16 %v550
        %v655 = vunpack.c.l.b16 %v551
        %v656 = vunpack.c.h.b16 %v551
        %v657 = vunpack.c.l.b16 %v552
        %v658 = vunpack.c.h.b16 %v552
        %v659 = vunpack.c.l.b16 %v553
        %v660 = vunpack.c.h.b16 %v553
        %v661 = vunpack.c.l.b16 %v554
        %v662 = vunpack.c.h.b16 %v554
        %v663 = vpack.c.b16 %v601, %v599
        %v664 = vpack.c.b16 %v602, %v600
        %v665 = vpack.c.b16 %v605, %v603
        %v666 = vpack.c.b16 %v606, %v604
        %v667 = vpack.c.b16 %v609, %v607
        %v668 = vpack.c.b16 %v610, %v608
        %v669 = vpack.c.b16 %v613, %v611
        %v670 = vpack.c.b16 %v614, %v612
        %v671 = vpack.c.b16 %v617, %v615
        %v672 = vpack.c.b16 %v618, %v616
        %v673 = vpack.c.b16 %v621, %v619
        %v674 = vpack.c.b16 %v622, %v620
        %v675 = vpack.c.b16 %v625, %v623
        %v676 = vpack.c.b16 %v626, %v624
        %v677 = vpack.c.b16 %v629, %v627
        %v678 = vpack.c.b16 %v630, %v628
        %v679 = vpack.c.b16 %v633, %v631
        %v680 = vpack.c.b16 %v634, %v632
        %v681 = vpack.c.b16 %v637, %v635
        %v682 = vpack.c.b16 %v638, %v636
        %v683 = vpack.c.b16 %v641, %v639
        %v684 = vpack.c.b16 %v642, %v640
        %v685 = vpack.c.b16 %v645, %v643
        %v686 = vpack.c.b16 %v646, %v644
        %v687 = vpack.c.b16 %v649, %v647
        %v688 = vpack.c.b16 %v650, %v648
        %v689 = vpack.c.b16 %v653, %v651
        %v690 = vpack.c.b16 %v654, %v652
        %v691 = vpack.c.b16 %v657, %v655
        %v692 = vpack.c.b16 %v658, %v656
        %v693 = vpack.c.b16 %v661, %v659
        %v694 = vpack.c.b16 %v662, %v660
        %727 = vmatprep.subr.bf16.mxu0 %v664
        %728 = vmatpush1.bf16.msra.mxu0 %v663
        %729 = vmatprep.subr.bf16.mxu0 %v666
        %730 = vmatpush1.bf16.msra.mxu0 %v665
        %731 = vmatprep.subr.bf16.mxu0 %v668
        %732 = vmatpush1.bf16.msra.mxu0 %v667
        %733 = vmatprep.subr.bf16.mxu0 %v670
        %734 = vmatpush1.bf16.msra.mxu0 %v669
        %735 = vmatprep.subr.bf16.mxu0 %v672
        %736 = vmatpush1.bf16.msra.mxu0 %v671
        %737 = vmatprep.subr.bf16.mxu0 %v674
        %738 = vmatpush1.bf16.msra.mxu0 %v673
        %739 = vmatprep.subr.bf16.mxu0 %v676
        %740 = vmatpush1.bf16.msra.mxu0 %v675
        %741 = vmatprep.subr.bf16.mxu0 %v678
        %742 = vmatpush1.bf16.msra.mxu0 %v677
        %743 = vmatprep.subr.bf16.mxu0 %v680
        %744 = vmatpush1.bf16.msra.mxu0 %v679
        %745 = vmatprep.subr.bf16.mxu0 %v682
        %746 = vmatpush1.bf16.msra.mxu0 %v681
        %747 = vmatprep.subr.bf16.mxu0 %v684
        %748 = vmatpush1.bf16.msra.mxu0 %v683
        %749 = vmatprep.subr.bf16.mxu0 %v686
        %750 = vmatpush1.bf16.msra.mxu0 %v685
        %751 = vmatprep.subr.bf16.mxu0 %v688
        %752 = vmatpush1.bf16.msra.mxu0 %v687
        %753 = vmatprep.subr.bf16.mxu0 %v690
        %754 = vmatpush1.bf16.msra.mxu0 %v689
        %755 = vmatprep.subr.bf16.mxu0 %v692
        %756 = vmatpush1.bf16.msra.mxu0 %v691
        %757 = vmatprep.subr.bf16.mxu0 %v694
        %758 = vmatpush1.bf16.msra.mxu0 %v693
        %759 = vmatprep.mubr.bf16.mxu0 %v520
        %760 = vmatmul.mubr.bf16.gmra.mrb[0].mxu0 %v519
        %v761 = vpop.f32.mrb[0].mxu0
        %v762 = vadd.f32 %v560, %v761
        %v763 = vpop.f32.mrb[0].mxu0
        %v764 = vadd.f32 %v564, %v763
        %v765 = vpop.f32.mrb[0].mxu0
        %v766 = vadd.f32 %v560, %v765
        %v767 = vpop.f32.mrb[0].mxu0
        %v768 = vadd.f32 %v564, %v767
        %769 = vmatprep.mubr.bf16.mxu0 %v522
        %770 = vmatmul.mubr.bf16.gmra.mrb[0].mxu0 %v521
        %v771 = vpop.f32.mrb[0].mxu0
        %v772 = vadd.f32 %v560, %v771
        %v773 = vpop.f32.mrb[0].mxu0
        %v774 = vadd.f32 %v564, %v773
        %v775 = vpop.f32.mrb[0].mxu0
        %v776 = vadd.f32 %v560, %v775
        %v777 = vpop.f32.mrb[0].mxu0
        %v778 = vadd.f32 %v564, %v777
        %779 = vdwg.mxu0
        %v780 = vmax.f32 %v762, 0.0
        %v781 = vmax.f32 %v764, 0.0
        %v782 = vmax.f32 %v766, 0.0
        %v783 = vmax.f32 %v768, 0.0
        %v784 = vmax.f32 %v772, 0.0
        %v785 = vmax.f32 %v774, 0.0
        %v786 = vmax.f32 %v776, 0.0
        %v787 = vmax.f32 %v778, 0.0
        %v788 = vpack.c.bf16 %v782, %v780
        %v789 = vpack.c.bf16 %v783, %v781
        %v790 = vpack.c.bf16 %v786, %v784
        %v791 = vpack.c.bf16 %v787, %v785
        %v792 = vld [vmem:[#allocation8] sm:$0xf]
        %v793 = vld [vmem:[#allocation8 + $0x4] sm:$0xf]
        %v794 = vld [vmem:[#allocation8 + $0x8] sm:$0xf]
        %v795 = vld [vmem:[#allocation8 + $0xc] sm:$0xf]
        %v796 = vld [vmem:[#allocation8 + $0x10] sm:$0xf]
        %v797 = vld [vmem:[#allocation8 + $0x14] sm:$0xf]
        %v798 = vld [vmem:[#allocation8 + $0x18] sm:$0xf]
        %v799 = vld [vmem:[#allocation8 + $0x1c] sm:$0xf]
        %v800 = vld [vmem:[#allocation8 + $0x20] sm:$0xf]
        %v801 = vld [vmem:[#allocation8 + $0x24] sm:$0xf]
        %v802 = vld [vmem:[#allocation8 + $0x28] sm:$0xf]
        %v803 = vld [vmem:[#allocation8 + $0x2c] sm:$0xf]
        %v804 = vld [vmem:[#allocation8 + $0x30] sm:$0xf]
        %v805 = vld [vmem:[#allocation8 + $0x34] sm:$0xf]
        %v806 = vld [vmem:[#allocation8 + $0x38] sm:$0xf]
        %v807 = vld [vmem:[#allocation8 + $0x3c] sm:$0xf]
        %v808 = vld [vmem:[#allocation8 + $0x40] sm:$0xf]
        %v809 = vld [vmem:[#allocation8 + $0x44] sm:$0xf]
        %v810 = vld [vmem:[#allocation8 + $0x48] sm:$0xf]
        %v811 = vld [vmem:[#allocation8 + $0x4c] sm:$0xf]
        %v812 = vld [vmem:[#allocation8 + $0x50] sm:$0xf]
        %v813 = vld [vmem:[#allocation8 + $0x54] sm:$0xf]
        %v814 = vld [vmem:[#allocation8 + $0x58] sm:$0xf]
        %v815 = vld [vmem:[#allocation8 + $0x5c] sm:$0xf]
        %v816 = vld [vmem:[#allocation8 + $0x60] sm:$0xf]
        %v817 = vld [vmem:[#allocation8 + $0x64] sm:$0xf]
        %v818 = vld [vmem:[#allocation8 + $0x68] sm:$0xf]
        %v819 = vld [vmem:[#allocation8 + $0x6c] sm:$0xf]
        %v820 = vld [vmem:[#allocation8 + $0x70] sm:$0xf]
        %v821 = vld [vmem:[#allocation8 + $0x74] sm:$0xf]
        %v822 = vld [vmem:[#allocation8 + $0x78] sm:$0xf]
        %v823 = vld [vmem:[#allocation8 + $0x7c] sm:$0xf]
        %v824 = vld [vmem:[%s6] sm:$0x1]
        %v826 = vlaneseq
        %v827 = vshrl.u32 %v826, 7
        %v828 = vsub.s32 0, %v827
        %v829 = vrot.slane %v824, %v828
        %v863 = vunpack.c.l.b16 %v792
        %v864 = vunpack.c.l.b16 %v793
        %v865 = vunpack.c.l.b16 %v794
        %v866 = vunpack.c.l.b16 %v795
        %v867 = vunpack.c.l.b16 %v796
        %v868 = vunpack.c.l.b16 %v797
        %v869 = vunpack.c.l.b16 %v798
        %v870 = vunpack.c.l.b16 %v799
        %v871 = vunpack.c.l.b16 %v800
        %v872 = vunpack.c.l.b16 %v801
        %v873 = vunpack.c.l.b16 %v802
        %v874 = vunpack.c.l.b16 %v803
        %v875 = vunpack.c.l.b16 %v804
        %v876 = vunpack.c.l.b16 %v805
        %v877 = vunpack.c.l.b16 %v806
        %v878 = vunpack.c.l.b16 %v807
        %v879 = vunpack.c.l.b16 %v808
        %v880 = vunpack.c.l.b16 %v809
        %v881 = vunpack.c.l.b16 %v810
        %v882 = vunpack.c.l.b16 %v811
        %v883 = vunpack.c.l.b16 %v812
        %v884 = vunpack.c.l.b16 %v813
        %v885 = vunpack.c.l.b16 %v814
        %v886 = vunpack.c.l.b16 %v815
        %v887 = vunpack.c.l.b16 %v816
        %v888 = vunpack.c.l.b16 %v817
        %v889 = vunpack.c.l.b16 %v818
        %v890 = vunpack.c.l.b16 %v819
        %v891 = vunpack.c.l.b16 %v820
        %v892 = vunpack.c.l.b16 %v821
        %v893 = vunpack.c.l.b16 %v822
        %v894 = vunpack.c.l.b16 %v823
        %v895 = vpack.c.b16 %v864, %v863
        %v896 = vpack.c.b16 %v866, %v865
        %v897 = vpack.c.b16 %v868, %v867
        %v898 = vpack.c.b16 %v870, %v869
        %v899 = vpack.c.b16 %v872, %v871
        %v900 = vpack.c.b16 %v874, %v873
        %v901 = vpack.c.b16 %v876, %v875
        %v902 = vpack.c.b16 %v878, %v877
        %v903 = vpack.c.b16 %v880, %v879
        %v904 = vpack.c.b16 %v882, %v881
        %v905 = vpack.c.b16 %v884, %v883
        %v906 = vpack.c.b16 %v886, %v885
        %v907 = vpack.c.b16 %v888, %v887
        %v908 = vpack.c.b16 %v890, %v889
        %v909 = vpack.c.b16 %v892, %v891
        %v910 = vpack.c.b16 %v894, %v893
        %927 = vmatprep.subr.bf16.mxu0 0
        %928 = vmatpush1.bf16.msra.mxu0 %v895
        %929 = vmatprep.subr.bf16.mxu0 0
        %930 = vmatpush1.bf16.msra.mxu0 %v896
        %931 = vmatprep.subr.bf16.mxu0 0
        %932 = vmatpush1.bf16.msra.mxu0 %v897
        %933 = vmatprep.subr.bf16.mxu0 0
        %934 = vmatpush1.bf16.msra.mxu0 %v898
        %935 = vmatprep.subr.bf16.mxu0 0
        %936 = vmatpush1.bf16.msra.mxu0 %v899
        %937 = vmatprep.subr.bf16.mxu0 0
        %938 = vmatpush1.bf16.msra.mxu0 %v900
        %939 = vmatprep.subr.bf16.mxu0 0
        %940 = vmatpush1.bf16.msra.mxu0 %v901
        %941 = vmatprep.subr.bf16.mxu0 0
        %942 = vmatpush1.bf16.msra.mxu0 %v902
        %943 = vmatprep.subr.bf16.mxu0 0
        %944 = vmatpush1.bf16.msra.mxu0 %v903
        %945 = vmatprep.subr.bf16.mxu0 0
        %946 = vmatpush1.bf16.msra.mxu0 %v904
        %947 = vmatprep.subr.bf16.mxu0 0
        %948 = vmatpush1.bf16.msra.mxu0 %v905
        %949 = vmatprep.subr.bf16.mxu0 0
        %950 = vmatpush1.bf16.msra.mxu0 %v906
        %951 = vmatprep.subr.bf16.mxu0 0
        %952 = vmatpush1.bf16.msra.mxu0 %v907
        %953 = vmatprep.subr.bf16.mxu0 0
        %954 = vmatpush1.bf16.msra.mxu0 %v908
        %955 = vmatprep.subr.bf16.mxu0 0
        %956 = vmatpush1.bf16.msra.mxu0 %v909
        %957 = vmatprep.subr.bf16.mxu0 0
        %958 = vmatpush1.bf16.msra.mxu0 %v910
        %959 = vmatprep.mubr.bf16.mxu0 %v789
        %960 = vmatmul.mubr.bf16.gmra.mrb[0].mxu0 %v788
        %v961 = vpop.f32.mrb[0].mxu0
        %v962 = vadd.f32 %v829, %v961
        %v963 = vpop.f32.mrb[0].mxu0
        %v964 = vpop.f32.mrb[0].mxu0
        %v965 = vadd.f32 %v829, %v964
        %v966 = vpop.f32.mrb[0].mxu0
        %967 = vmatprep.mubr.bf16.mxu0 %v791
        %968 = vmatmul.mubr.bf16.gmra.mrb[0].mxu0 %v790
        %v969 = vpop.f32.mrb[0].mxu0
        %v970 = vadd.f32 %v829, %v969
        %v971 = vpop.f32.mrb[0].mxu0
        %v972 = vpop.f32.mrb[0].mxu0
        %v973 = vadd.f32 %v829, %v972
        %v974 = vpop.f32.mrb[0].mxu0
        %975 = vdwg.mxu0
        %976 = vst [vmem:[%s340] sm:$0xff] %v962
        %977 = vst [vmem:[%s340 + $0x8] sm:$0xff] %v965
        %978 = vst [vmem:[%s340 + $0x10] sm:$0xff] %v970
        %979 = vst [vmem:[%s340 + $0x18] sm:$0xff] %v973
        %s980 = sand.u32 %s186, 1
        %s981 = scalar_lea.sflag [#allocation4], %s980
        %s982 = sand.u32 %s186, 1
        %s983 = smul.addr %s982, 32
        %s984 = scalar_lea.vmem [#allocation10], %s983
        // Predicated region
        $region65: #{tpu_custom_call.1} parent=47 // pred_check
          %p985 = pneg %p196
        $region66: #{tpu_custom_call.1} parent=47 // pred_check_branch
          %987 = sbr.rel (%p985) target = $region68
        $region67: #{tpu_custom_call.1} parent=47 // pred_region
          %s988 = smul.u32 4, %s26
          %s990 = ssub.s32 512, 512
          %991 = vsyncadd %s981, %s990
          %s992 = smul.addr %s988, 128
          %s993 = scalar_lea.hbm %s7, %s992
          %s994 = sshll.u32 %s984, 4
          %s995 = int_to_ptr.vmem [resolvable:$true] %s994
          %1000 = dma.vmem_to_hbm [thread:$0]  %s995, 512, %s993, %s981, 128, 128, 8
        $region68: #{tpu_custom_call.1} parent=47 // pred_fallthru
          _
      $region48: #{tpu_custom_call.1} parent=5 // pred_fallthru
        _
      %p1001 = scmp.le.s32.totalorder 2, %s21
      // Predicated region
      $region69: #{tpu_custom_call.1} parent=5 // pred_check
        %p1002 = pneg %p1001
      $region70: #{tpu_custom_call.1} parent=5 // pred_check_branch
        %1004 = sbr.rel (%p1002) target = $region72
      $region71: #{tpu_custom_call.1} parent=5 // pred_region
        %s1005 = ssub.s32 %s21, 2
        // Predicated region
        $region73: #{tpu_custom_call.1} parent=71 // pred_check
          %p1006 = pneg %p202
        $region74: #{tpu_custom_call.1} parent=71 // pred_check_branch
          %1008 = sbr.rel (%p1006) target = $region76
        $region75: #{tpu_custom_call.1} parent=71 // pred_region
          %s1009 = sand.u32 %s187, 1
          %s1010 = scalar_lea.sflag [#allocation4], %s1009
          %s1011 = sand.u32 %s187, 1
          %s1012 = smul.addr %s1011, 32
          %s1013 = scalar_lea.vmem [#allocation10], %s1012
          %1014 = dma.done %s1010, 512
        $region76: #{tpu_custom_call.1} parent=71 // pred_fallthru
          _
      $region72: #{tpu_custom_call.1} parent=5 // pred_fallthru
        _
    $region6: #{tpu_custom_call.1} parent=1 // loop_footer
      %s25 = sadd.s32 1, %s21
    $region7: #{tpu_custom_call.1} parent=1 // loop_footer_branch
      %20 = sbr.rel target = $region3
    $region8: #{tpu_custom_call.1} parent=1 // loop_exit
      _
    %1015 = vsyncpa [#allocation3], 1
    %s1016 = scalar_lea.sflag [#allocation3], 1
    %1017 = vsyncpa %s1016, 1
    %1018 = vsyncpa [#allocation6], 1
    %1019 = vsyncpa [#allocation9], 1
    %1020 = vsyncpa [#allocation4], 1
    %s1021 = scalar_lea.sflag [#allocation4], 1
    %1022 = vsyncpa %s1021, 1

</llo_original>
